<compile_context>
chip_gen: v6e
topology: v6e:2x2x1
jax: 0.10.0
libtpu: 0.0.40
codegen_flags: <defaults>
</compile_context>

<pallas_src>
import functools

import jax
import jax.numpy as jnp
from jax import lax
from jax.experimental import pallas as pl
from jax.experimental.pallas import tpu as pltpu

SMOOTH = 1e-6

# Per-input, per-pipeline-buffer block budget (bytes).  2 MiB -> 8 MiB of
# double-buffered input VMEM, large enough to amortize the ~0.35 us fixed
# per-grid-step overhead even at v7x's 3.2 TB/s HBM, small enough to leave
# room for elementwise temporaries under the 32 MiB scoped limit below.
_BLOCK_BYTES = 2 * 1024 * 1024
_VMEM_LIMIT_BYTES = 32 * 1024 * 1024


def _cdiv(a, b):
    return -(-a // b)


def _round_down(a, b):
    return (a // b) * b


def _round_up(a, b):
    return _cdiv(a, b) * b


def _fold_lanes(x):
    """result[b, l] = sum_j x[b, 128*j + l] via a VALU add-tree.

    Uses only 128-aligned static slices (no relayout) and plain vreg adds, so
    no per-step XLU reduce; the single cross-lane reduce happens at finalize.
    Requires x.shape[-1] % 128 == 0.
    """
    td = x.shape[-1]
    parts = [x[:, j * 128:(j + 1) * 128] for j in range(td // 128)]
    while len(parts) > 1:
        nxt = []
        for a in range(0, len(parts) - 1, 2):
            nxt.append(parts[a] + parts[a + 1])
        if len(parts) % 2:
            nxt.append(parts[-1])
        parts = nxt
    return parts[0]


def _iou_loss_kernel(pred_ref, gt_ref, out_ref, acc_ref, *, td, kpc, true_d,
                     need_mask):
    # pred_ref / gt_ref: (TB, TD) tile; out_ref: (TB, 1) partial-sum slot for
    # this (batch tile, chunk); acc_ref: (TB, acc_w) f32 scratch.
    c = pl.program_id(1)          # D-chunk (megacore "parallel" split)
    k = pl.program_id(2)          # D tile within the chunk ("arbitrary")

    @pl.when(k == 0)
    def _init():
        acc_ref[...] = jnp.zeros_like(acc_ref)

    # f32 math on every generation (v5e has no bf16 VALU/EUP); narrow inputs
    # are widened only here, after streaming from HBM at their narrow width.
    p = pred_ref[...].astype(jnp.float32)
    g = gt_ref[...].astype(jnp.float32)
    inter = p * g
    union = p + g - inter
    # Approx reciprocal runs on the otherwise-idle EUP slot.
    ratio = inter * pl.reciprocal(union + SMOOTH, approx=True)

    if need_mask:
        # Zero lanes past the true (unpadded) reduction length.  Applied to
        # `ratio` (not the inputs) so garbage in out-of-bounds lanes -- which
        # may be Inf/NaN -- is killed by the select.
        lane = lax.broadcasted_iota(jnp.int32, ratio.shape, 1)
        d_start = (c * kpc + k) * td
        ratio = jnp.where(d_start + lane < true_d, ratio, 0.0)

    if acc_ref.shape[-1] == 1:
        # TD not a multiple of 128 (single-tile small-D case): direct row sum.
        acc_ref[...] += jnp.sum(ratio, axis=-1, keepdims=True)
    else:
        # Lane-wise partial sums: pure VALU adds per step, one XLU at the end.
        acc_ref[...] += _fold_lanes(ratio)

    @pl.when(k == pl.num_programs(2) - 1)
    def _finalize():
        out_ref[...] = jnp.sum(acc_ref[...], axis=-1,
                               keepdims=True).astype(out_ref.dtype)


def iou_loss(pred, gt, *, block_bytes=_BLOCK_BYTES):
    """pred, gt: (N, ...) -> loss: (N,) f32.  Matches PyTorch IoULoss.forward."""
    assert pred.shape == gt.shape
    n = pred.shape[0]
    d = 1
    for s in pred.shape[1:]:
        d *= s
    assert n >= 1 and d >= 1

    itemsize = jnp.dtype(pred.dtype).itemsize
    # Sublane packing: 8 for 4-byte, 16 for 2-byte, 32 for 1-byte dtypes.
    pack = max(8, 8 * (4 // itemsize))

    # ---- Tile selection (no padded copies of the inputs). ----
    tb0 = n if n < pack else pack
    td_cap = max(128, _round_down(block_bytes // (tb0 * itemsize), 128))
    td = d if d <= td_cap else td_cap
    if n > pack:
        # Grow TB (in multiples of the sublane pack) when D is small, so each
        # block stays ~block_bytes and per-step overhead stays amortized.
        want_tb = max(pack, _round_down(block_bytes // (td * itemsize), pack))
        tb = min(want_tb, _round_up(n, pack))
    else:
        tb = tb0

    batch_tiles = _cdiv(n, tb)
    n_k = _cdiv(d, td)

    # v7x megacore: with a single batch tile, split D into 2 "parallel" chunks
    # so both TensorCores stream half the bytes; the tiny cross-chunk combine
    # happens in the wrapper.  Harmless on 1-TC chips (v5e/v6e).
    num_chunks = 2 if (batch_tiles < 2 and n_k >= 2) else 1
    kpc = _cdiv(n_k, num_chunks)

    need_mask = (n_k * td != d) or (num_chunks * kpc != n_k)
    acc_w = 128 if td % 128 == 0 else 1
    n_out = batch_tiles * tb  # only the (tiny) output is ever padded

    pred2 = pred.reshape(n, d)
    gt2 = gt.reshape(n, d)

    kernel = functools.partial(_iou_loss_kernel, td=td, kpc=kpc, true_d=d,
                               need_mask=need_mask)

    def in_map(i, c, k):
        # Clamp the D-block index for a possibly overhanging last chunk; the
        # in-kernel mask zeroes any lanes past the true D anyway.
        return (i, jnp.minimum(c * kpc + k, n_k - 1))

    partial_sums = pl.pallas_call(
        kernel,
        out_shape=jax.ShapeDtypeStruct((num_chunks, n_out, 1), jnp.float32),
        grid_spec=pltpu.PrefetchScalarGridSpec(
            num_scalar_prefetch=0,
            grid=(batch_tiles, num_chunks, kpc),
            in_specs=[
                pl.BlockSpec((tb, td), in_map),
                pl.BlockSpec((tb, td), in_map),
            ],
            out_specs=pl.BlockSpec((None, tb, 1), lambda i, c, k: (c, i, 0)),
            scratch_shapes=[pltpu.VMEM((tb, acc_w), jnp.float32)],
        ),
        compiler_params=pltpu.CompilerParams(
            dimension_semantics=("parallel", "parallel", "arbitrary"),
            vmem_limit_bytes=_VMEM_LIMIT_BYTES,
        ),
    )(pred2, gt2)

    sums = jnp.sum(partial_sums, axis=0)[:n, 0]          # (N,) true-row sums
    return 1.0 - sums / jnp.float32(d)


def iou_loss_ref(pred, gt):
    """Pure-JAX reference (exact divide) for correctness check."""
    intersection = pred * gt
    union = pred + gt - intersection
    loss = (intersection / (union + SMOOTH)).mean(axis=(1, 2, 3))
    return 1.0 - loss


def _check(pred, gt, **kw):
    out = iou_loss(pred, gt, **kw)
    jax.block_until_ready(out)
    ref = iou_loss_ref(pred.astype(jnp.float32), gt.astype(jnp.float32))
    assert out.shape == (pred.shape[0],), out.shape
    # Tolerance covers the approx (EUP) reciprocal (~2^-12 rel. error).
    assert jnp.allclose(out, ref, atol=2e-3, rtol=2e-3), (out, ref)
    return out


if __name__ == "__main__":
    key = jax.random.PRNGKey(0)
    k1, k2, k3, k4, k5, k6 = jax.random.split(key, 6)

    # Main case (the module's typical shape): N=2, C=4, H=W=16, f32 in [0,1].
    pred = jax.random.uniform(k1, (2, 4, 16, 16), dtype=jnp.float32)
    gt = (jax.random.uniform(k2, (2, 4, 16, 16)) > 0.5).astype(jnp.float32)
    _check(pred, gt)

    # Exercise the in-kernel D mask + 2-chunk (megacore) split path
    # (D = 210 not a multiple of 128, single batch tile, tiny forced tiles).
    pred_b = jax.random.uniform(k3, (3, 3, 10, 7), dtype=jnp.float32)
    gt_b = (jax.random.uniform(k4, (3, 3, 10, 7)) > 0.5).astype(jnp.float32)
    _check(pred_b, gt_b, block_bytes=1024)

    # Exercise the batch-remainder (partial last batch block) path: N=10.
    pred_c = jax.random.uniform(k5, (10, 4, 16, 16), dtype=jnp.float32)
    gt_c = (jax.random.uniform(k6, (10, 4, 16, 16)) > 0.5).astype(jnp.float32)
    _check(pred_c, gt_c, block_bytes=4096)

    print("KERNEL_OK")
</pallas_src>

<mosaic_0001>
module attributes {stable_mosaic.version = 11 : i64} {
  func.func @_iou_loss_kernel(%arg0: i32, %arg1: i32, %arg2: i32, %arg3: memref<2x1024xf32, #tpu.memory_space<vmem>>, %arg4: memref<2x1024xf32, #tpu.memory_space<vmem>>, %arg5: memref<1x2x1xf32, #tpu.memory_space<vmem>>, %arg6: memref<2x128xf32, #tpu.memory_space<vmem>>) attributes {dimension_semantics = [#tpu.dimension_semantics<parallel>, #tpu.dimension_semantics<parallel>, #tpu.dimension_semantics<arbitrary>], iteration_bounds = array<i64: 1, 1, 1>, scalar_prefetch = 0 : i64, scratch_operands = 1 : i64, tpu.core_type = #tpu.core_type<tc>, window_params = [{transform_indices = @transform_0, window_bounds = array<i64: 2, 1024>}, {transform_indices = @transform_1, window_bounds = array<i64: 2, 1024>}, {transform_indices = @transform_2, window_bounds = array<i64: 1, 2, 1>}]} {
    %c0_i32 = arith.constant 0 : i32
    %0 = arith.cmpi eq, %arg2, %c0_i32 : i32
    %1 = arith.extui %0 : i1 to i32
    %c0_i32_0 = arith.constant 0 : i32
    %2 = arith.cmpi ne, %1, %c0_i32_0 : i32
    scf.if %2 {
      %cst_10 = arith.constant 0.000000e+00 : f32
      %33 = vector.broadcast %cst_10 : f32 to vector<2x128xf32>
      %c0_11 = arith.constant 0 : index
      %c0_12 = arith.constant 0 : index
      %34 = vector.load %arg6[%c0_11, %c0_12] : memref<2x128xf32, #tpu.memory_space<vmem>>, vector<2x128xf32>
      tpu.vector_store %arg6[%c0_11, %c0_12], %33 {strides = array<i32>} : memref<2x128xf32, #tpu.memory_space<vmem>>, vector<2x128xf32>,
    } else {
    }
    %c0 = arith.constant 0 : index
    %c0_1 = arith.constant 0 : index
    %3 = vector.load %arg3[%c0, %c0_1] : memref<2x1024xf32, #tpu.memory_space<vmem>>, vector<2x1024xf32>
    %c0_2 = arith.constant 0 : index
    %c0_3 = arith.constant 0 : index
    %4 = vector.load %arg4[%c0_2, %c0_3] : memref<2x1024xf32, #tpu.memory_space<vmem>>, vector<2x1024xf32>
    %5 = arith.mulf %3, %4 : vector<2x1024xf32>
    %6 = arith.addf %3, %4 : vector<2x1024xf32>
    %7 = arith.subf %6, %5 : vector<2x1024xf32>
    %cst = arith.constant 9.99999997E-7 : f32
    %8 = vector.broadcast %cst : f32 to vector<2x1024xf32>
    %9 = arith.addf %7, %8 : vector<2x1024xf32>
    %10 = tpu.reciprocal %9 {approx = true} : vector<2x1024xf32> -> vector<2x1024xf32>
    %11 = arith.mulf %5, %10 : vector<2x1024xf32>
    %c0_4 = arith.constant 0 : index
    %c0_5 = arith.constant 0 : index
    %12 = vector.load %arg6[%c0_4, %c0_5] : memref<2x128xf32, #tpu.memory_space<vmem>>, vector<2x128xf32>
    %13 = vector.extract_strided_slice %11 {offsets = [0, 0], sizes = [2, 128], strides = [1, 1]} : vector<2x1024xf32> to vector<2x128xf32>
    %14 = vector.extract_strided_slice %11 {offsets = [0, 128], sizes = [2, 128], strides = [1, 1]} : vector<2x1024xf32> to vector<2x128xf32>
    %15 = vector.extract_strided_slice %11 {offsets = [0, 256], sizes = [2, 128], strides = [1, 1]} : vector<2x1024xf32> to vector<2x128xf32>
    %16 = vector.extract_strided_slice %11 {offsets = [0, 384], sizes = [2, 128], strides = [1, 1]} : vector<2x1024xf32> to vector<2x128xf32>
    %17 = vector.extract_strided_slice %11 {offsets = [0, 512], sizes = [2, 128], strides = [1, 1]} : vector<2x1024xf32> to vector<2x128xf32>
    %18 = vector.extract_strided_slice %11 {offsets = [0, 640], sizes = [2, 128], strides = [1, 1]} : vector<2x1024xf32> to vector<2x128xf32>
    %19 = vector.extract_strided_slice %11 {offsets = [0, 768], sizes = [2, 128], strides = [1, 1]} : vector<2x1024xf32> to vector<2x128xf32>
    %20 = vector.extract_strided_slice %11 {offsets = [0, 896], sizes = [2, 128], strides = [1, 1]} : vector<2x1024xf32> to vector<2x128xf32>
    %21 = arith.addf %13, %14 : vector<2x128xf32>
    %22 = arith.addf %15, %16 : vector<2x128xf32>
    %23 = arith.addf %17, %18 : vector<2x128xf32>
    %24 = arith.addf %19, %20 : vector<2x128xf32>
    %25 = arith.addf %21, %22 : vector<2x128xf32>
    %26 = arith.addf %23, %24 : vector<2x128xf32>
    %27 = arith.addf %25, %26 : vector<2x128xf32>
    %28 = arith.addf %12, %27 : vector<2x128xf32>
    %c0_6 = arith.constant 0 : index
    %c0_7 = arith.constant 0 : index
    %29 = vector.load %arg6[%c0_6, %c0_7] : memref<2x128xf32, #tpu.memory_space<vmem>>, vector<2x128xf32>
    tpu.vector_store %arg6[%c0_6, %c0_7], %28 {strides = array<i32>} : memref<2x128xf32, #tpu.memory_space<vmem>>, vector<2x128xf32>,
    %c0_i32_8 = arith.constant 0 : i32
    %30 = arith.cmpi eq, %arg2, %c0_i32_8 : i32
    %31 = arith.extui %30 : i1 to i32
    %c0_i32_9 = arith.constant 0 : i32
    %32 = arith.cmpi ne, %31, %c0_i32_9 : i32
    scf.if %32 {
      %c0_10 = arith.constant 0 : index
      %c0_11 = arith.constant 0 : index
      %33 = vector.load %arg6[%c0_10, %c0_11] : memref<2x128xf32, #tpu.memory_space<vmem>>, vector<2x128xf32>
      %cst_12 = arith.constant dense<0.000000e+00> : vector<2xf32>
      %34 = vector.multi_reduction <add>, %33, %cst_12 [1] : vector<2x128xf32> to vector<2xf32>
      %35 = vector.shape_cast %34 : vector<2xf32> to vector<2x1xf32>
      %c0_13 = arith.constant 0 : index
      %c0_14 = arith.constant 0 : index
      %c0_15 = arith.constant 0 : index
      %36 = vector.load %arg5[%c0_13, %c0_14, %c0_15] : memref<1x2x1xf32, #tpu.memory_space<vmem>>, vector<1x2x1xf32>
      %37 = vector.shape_cast %36 : vector<1x2x1xf32> to vector<2x1xf32>
      %38 = vector.shape_cast %35 : vector<2x1xf32> to vector<1x2x1xf32>
      tpu.vector_store %arg5[%c0_13, %c0_14, %c0_15], %38 {strides = array<i32>} : memref<1x2x1xf32, #tpu.memory_space<vmem>>, vector<1x2x1xf32>,
    } else {
    }
    return
  }
  func.func @transform_0(%arg0: i32, %arg1: i32, %arg2: i32) -> (i32, i32) {
    %c1_i32 = arith.constant 1 : i32
    %0 = arith.muli %arg1, %c1_i32 : i32
    %1 = arith.addi %0, %arg2 : i32
    %c0_i32 = arith.constant 0 : i32
    %2 = arith.minsi %1, %c0_i32 : i32
    %c0_i32_0 = arith.constant 0 : i32
    return %arg0, %2 : i32, i32
  }
  func.func @transform_1(%arg0: i32, %arg1: i32, %arg2: i32) -> (i32, i32) {
    %c1_i32 = arith.constant 1 : i32
    %0 = arith.muli %arg1, %c1_i32 : i32
    %1 = arith.addi %0, %arg2 : i32
    %c0_i32 = arith.constant 0 : i32
    %2 = arith.minsi %1, %c0_i32 : i32
    %c0_i32_0 = arith.constant 0 : i32
    return %arg0, %2 : i32, i32
  }
  func.func @transform_2(%arg0: i32, %arg1: i32, %arg2: i32) -> (i32, i32, i32) {
    %c0_i32 = arith.constant 0 : i32
    %c0_i32_0 = arith.constant 0 : i32
    return %arg1, %arg0, %c0_i32 : i32, i32, i32
  }
}

</mosaic_0001>

<llo_original>
// kernel: tpu_custom_call.1
$region0: #{tpu_custom_call.1}
  #allocation0 [shape = 'u32[]', space=smem, size = 0x4, offset = 0x4, fixed_abs, tag = 'smem constant byte address 0x4 - core index']
  #allocation1 [shape = 'u32[144,128]{1,0:T(1,128)}', space=vmem, size = 0x12000, scoped, tag = 'internal scratch']
  #allocation2 [shape = 'f32[2,128]{1,0:T(2,128)}', space=vmem, size = 0x400, scoped, tag = 'scratch operand']
  %s0 = inlined_call_operand.hbm [shape: f32[2,1024], index: 0, kind: input, shape index: {}]
  %s1 = inlined_call_operand.hbm [shape: f32[2,1024], index: 1, kind: input, shape index: {}]
  %s2 = inlined_call_operand.vmem [shape: f32[1,2,1], index: 2, kind: output, shape index: {}]
  %s3 = sld [smem:[#allocation0]]
  $region34: #{tpu_custom_call.1} parent=0
    _
  %s5 = ssub.s32 1, %s3
  %s6 = scalar_select 0, %s5, %s3
  $region1: #{tpu_custom_call.1} parent=0
    #allocation3 [shape = 'u8[8192]{0}', space=vmem, size = 0x2000, scoped, tag = 'input window, operand 0, single buffered']
    #allocation4 [shape = 's32[1]{0}', space=sflag, size = 0x4, scoped, tag = 'scoped memory for tpu_custom_call.1']
    #allocation5 [shape = 'u8[8192]{0}', space=vmem, size = 0x2000, scoped, tag = 'input window, operand 1, single buffered']
    #allocation6 [shape = 's32[1]{0}', space=sflag, size = 0x4, scoped, tag = 'scoped memory for tpu_custom_call.1']
    %7 = vsyncpa [#allocation4], 0
    %8 = vsyncpa [#allocation6], 0
    // Predicated region
    $region2: #{tpu_custom_call.1} parent=1 // pred_check
      _
    $region3: #{tpu_custom_call.1} parent=1 // pred_check_branch
      %10 = sbr.rel (0) target = $region5
    $region4: #{tpu_custom_call.1} parent=1 // pred_region
      %s11 = sadd.s32 0, 0
      %p12 = scmp.lt.s32.totalorder %s11, 0
      %s13 = scalar_select %p12, %s11, 0
      %s14 = smul.u32 8, %s13
      %s16 = ssub.s32 256, 256
      %17 = vsyncadd [#allocation4], %s16
      %s18 = smul.addr %s14, 32
      %s19 = scalar_lea.hbm %s0, %s18
      %s21 = sshll.u32 [#allocation3], 4
      %s22 = int_to_ptr.vmem [resolvable:$true] %s21
      %24 = dma.hbm_to_vmem [thread:$0]  %s19, 256, %s22, [#allocation4]
    $region5: #{tpu_custom_call.1} parent=1 // pred_fallthru
      _
    // Predicated region
    $region6: #{tpu_custom_call.1} parent=1 // pred_check
      _
    $region7: #{tpu_custom_call.1} parent=1 // pred_check_branch
      %26 = sbr.rel (0) target = $region9
    $region8: #{tpu_custom_call.1} parent=1 // pred_region
      %s27 = sadd.s32 0, 0
      %p28 = scmp.lt.s32.totalorder %s27, 0
      %s29 = scalar_select %p28, %s27, 0
      %s30 = smul.u32 8, %s29
      %s32 = ssub.s32 256, 256
      %33 = vsyncadd [#allocation6], %s32
      %s34 = smul.addr %s30, 32
      %s35 = scalar_lea.hbm %s1, %s34
      %s37 = sshll.u32 [#allocation5], 4
      %s38 = int_to_ptr.vmem [resolvable:$true] %s37
      %40 = dma.hbm_to_vmem [thread:$0]  %s35, 256, %s38, [#allocation6]
    $region9: #{tpu_custom_call.1} parent=1 // pred_fallthru
      _
    // Predicated region
    $region10: #{tpu_custom_call.1} parent=1 // pred_check
      _
    $region11: #{tpu_custom_call.1} parent=1 // pred_check_branch
      %42 = sbr.rel (0) target = $region13
    $region12: #{tpu_custom_call.1} parent=1 // pred_region
      %43 = dma.done [#allocation4], 256
    $region13: #{tpu_custom_call.1} parent=1 // pred_fallthru
      _
    // Predicated region
    $region14: #{tpu_custom_call.1} parent=1 // pred_check
      _
    $region15: #{tpu_custom_call.1} parent=1 // pred_check_branch
      %45 = sbr.rel (0) target = $region17
    $region16: #{tpu_custom_call.1} parent=1 // pred_region
      %46 = dma.done [#allocation6], 256
    $region17: #{tpu_custom_call.1} parent=1 // pred_fallthru
      _
    %s47 = sadd.s32 0, 0
    %p48 = scmp.lt.s32.totalorder %s47, 0
    %s49 = scalar_select %p48, %s47, 0
    %s50 = smul.u32 8, %s49
    %s51 = sadd.s32 0, 0
    %p52 = scmp.lt.s32.totalorder %s51, 0
    %s53 = scalar_select %p52, %s51, 0
    %s54 = smul.u32 8, %s53
    %p55 = scmp.eq.s32.totalorder 0, 0
    // Predicated region
    $region18: #{tpu_custom_call.1} parent=1 // pred_check
      %p56 = pneg %p55
    $region19: #{tpu_custom_call.1} parent=1 // pred_check_branch
      %58 = sbr.rel (%p56) target = $region21
    $region20: #{tpu_custom_call.1} parent=1 // pred_region
      %59 = vst [vmem:[#allocation2] sm:$0x3] 0.0
    $region21: #{tpu_custom_call.1} parent=1 // pred_fallthru
      _
    %v60 = vld [vmem:[#allocation3] sm:$0xff]
    %v61 = vld [vmem:[#allocation3 + $0x8] sm:$0xff]
    %v62 = vld [vmem:[#allocation5] sm:$0xff]
    %v63 = vld [vmem:[#allocation5 + $0x8] sm:$0xff]
    %v64 = vmul.f32 %v60, %v62
    %v65 = vmul.f32 %v61, %v63
    %v66 = vadd.f32 %v60, %v62
    %v67 = vadd.f32 %v61, %v63
    %v68 = vsub.f32 %v66, %v64
    %v69 = vsub.f32 %v67, %v65
    %v70 = vadd.f32 %v68, 1e-06
    %v71 = vadd.f32 %v69, 1e-06
    %v72 = vrcp.pop %v70
    %v73 = vrcp.pop %v71
    %v74 = vmul.f32 %v64, %v72
    %v75 = vmul.f32 %v65, %v73
    %v76 = vld [vmem:[#allocation2] sm:$0x3]
    %v78 = vrot.slane %v74, 2
    %v80 = vadd.f32 %v74, %v78
    %v81 = vrot.slane %v74, 4
    %v83 = vrot.slane %v74, 6
    %v85 = vadd.f32 %v81, %v83
    %v87 = vrot.slane %v75, 2
    %v89 = vadd.f32 %v75, %v87
    %v90 = vrot.slane %v75, 4
    %v92 = vrot.slane %v75, 6
    %v94 = vadd.f32 %v90, %v92
    %v95 = vadd.f32 %v80, %v85
    %v96 = vadd.f32 %v89, %v94
    %v97 = vadd.f32 %v95, %v96
    %v98 = vadd.f32 %v76, %v97
    %99 = vst [vmem:[#allocation2] sm:$0x3] %v98
    // Predicated region
    $region22: #{tpu_custom_call.1} parent=1 // pred_check
      %p100 = pneg %p55
    $region23: #{tpu_custom_call.1} parent=1 // pred_check_branch
      %102 = sbr.rel (%p100) target = $region25
    $region24: #{tpu_custom_call.1} parent=1 // pred_region
      %v103 = vld [vmem:[#allocation2] sm:$0x3]
      %vm104 = vcmask 1041408
      %v105 = vsel %vm104, %v103, 0.0
      %106 = vadd.xlane.f32.xlu0 %v105
      %v107 = vpop.xlane.xlu0 %106
      %vm108 = vcmask 1024
      %109 = vst.msk [vmem:[%s2] sm:$0x3] %vm108, %v107
    $region25: #{tpu_custom_call.1} parent=1 // pred_fallthru
      _
    // Predicated region
    $region26: #{tpu_custom_call.1} parent=1 // pred_check
      _
    $region27: #{tpu_custom_call.1} parent=1 // pred_check_branch
      %111 = sbr.rel (0) target = $region29
    $region28: #{tpu_custom_call.1} parent=1 // pred_region
      _
    $region29: #{tpu_custom_call.1} parent=1 // pred_fallthru
      _
    // Predicated region
    $region30: #{tpu_custom_call.1} parent=1 // pred_check
      _
    $region31: #{tpu_custom_call.1} parent=1 // pred_check_branch
      %113 = sbr.rel (0) target = $region33
    $region32: #{tpu_custom_call.1} parent=1 // pred_region
      _
    $region33: #{tpu_custom_call.1} parent=1 // pred_fallthru
      _
    %114 = vsyncpa [#allocation4], 1
    %115 = vsyncpa [#allocation6], 1

</llo_original>
